<compile_context>
chip_gen: v7x
topology: tpu7x:2x2x1
jax: 0.10.0
libtpu: 0.0.40
codegen_flags: <defaults>
</compile_context>

<pallas_src>
import functools

import jax
import jax.numpy as jnp
from jax.experimental import pallas as pl
from jax.experimental.pallas import tpu as pltpu


def _add_kernel(a_ref, b_ref, o_ref):
    # Elementwise add of the current VMEM tiles (VPU hot path).
    o_ref[...] = a_ref[...] + b_ref[...]


_LANE_WIDTHS = (8192, 4096, 2048, 1024, 512, 256, 128)  # candidate lane-dense widths


@functools.lru_cache(maxsize=1)
def _chip_params():
    """Generation-aware tiling parameters derived from physical VMEM size."""
    try:
        cap = int(pltpu.get_tpu_info().vmem_capacity_bytes)
        # v7x has 64 MiB VMEM per TensorCore and 2 TCs; v5e/v6e have 128 MiB / 1 TC.
        multi_core = cap < (100 << 20)
    except Exception:
        cap = 64 << 20       # conservative budget: valid on every generation
        multi_core = True    # assume 2 TCs so we never under-split
    budget = (cap * 3) // 4                      # leave headroom in physical VMEM
    block_bytes = max(budget // 6, 2 << 20)      # 3 refs x 2 pipeline buffers
    vmem_limit = min(cap - (4 << 20), block_bytes * 6 + (8 << 20))
    vmem_limit = max(vmem_limit, 32 << 20)
    # Faster HBM (v7x) raises the size below which XLA's fused add wins.
    small_bypass = (4 << 20) if multi_core else (1 << 20)
    return block_bytes, vmem_limit, multi_core, small_bypass


def add_op(a: jax.Array, b: jax.Array, *, force_pallas: bool = False) -> jax.Array:
    """Elementwise add via a tiled Pallas kernel (no broadcasting, like AddOp)."""
    assert a.shape == b.shape and a.dtype == b.dtype
    orig_shape = a.shape
    n = a.size
    if n == 0:
        return a + b

    itemsize = jnp.dtype(a.dtype).itemsize
    block_bytes, vmem_limit, multi_core, small_bypass = _chip_params()

    # Small-input bypass: launch + pipeline prologue dominates for tiny tensors.
    if not force_pallas and n * itemsize < small_bypass:
        return a + b

    # Ragged element count: padding would add a full extra HBM pass over both
    # inputs, and XLA's fused add is already near roofline -> let XLA handle it.
    if n % 128 != 0:
        return a + b

    # Native sublane tile per dtype: 8 for f32, 16 for bf16, 32 for int8/fp8.
    sub = max(8, 32 // itemsize)

    # Widest lane-dense width that still leaves >= `sub` rows (full vreg tiles);
    # otherwise just the widest width that divides n.
    width = None
    for w in _LANE_WIDTHS:
        if n % w == 0 and (n // w) >= sub:
            width = w
            break
    if width is None:
        for w in _LANE_WIDTHS:
            if n % w == 0:
                width = w
                break
    rows = n // width
    a2 = a.reshape(rows, width)
    b2 = b.reshape(rows, width)

    # Row-only tiling: block = (tile_r, full width), sized from the VMEM budget
    # so 3 refs x 2 pipeline buffers fit with headroom on every generation.
    tile_r = (block_bytes // (width * itemsize)) // sub * sub
    tile_r = max(tile_r, sub)
    if rows <= tile_r:
        tile_r = rows  # full-dim block (exempt from the sublane divisibility rule)
    num_blocks = pl.cdiv(rows, tile_r)

    if multi_core and num_blocks < 4 and rows >= 4 * sub:
        # 2-TC chips (v7x): >=4 balanced blocks -> >=2 per core, so writeback /
        # prefetch overlap compute on both cores instead of fully serializing.
        tile_r = max(sub, (rows // 4) // sub * sub)
        num_blocks = pl.cdiv(rows, tile_r)

    cost = pl.CostEstimate(
        flops=n, bytes_accessed=3 * n * itemsize, transcendentals=0
    )

    out2 = pl.pallas_call(
        _add_kernel,
        out_shape=jax.ShapeDtypeStruct((rows, width), a2.dtype),
        grid=(num_blocks,),
        in_specs=[
            pl.BlockSpec((tile_r, width), lambda i: (i, 0)),
            pl.BlockSpec((tile_r, width), lambda i: (i, 0)),
        ],
        out_specs=pl.BlockSpec((tile_r, width), lambda i: (i, 0)),
        compiler_params=pltpu.CompilerParams(
            dimension_semantics=("parallel",),
            vmem_limit_bytes=vmem_limit,
        ),
        cost_estimate=cost,
    )(a2, b2)

    return out2.reshape(orig_shape)


def my_network_forward(input1: jax.Array, input2: jax.Array, *, force_pallas: bool = False) -> jax.Array:
    """Forward pass of MyNetwork: AddOpFunction.apply(input1, input2)."""
    # TODO(synk): custom backward (grad passthrough to both inputs) is not implemented here.
    return add_op(input1, input2, force_pallas=force_pallas)


if __name__ == "__main__":
    key = jax.random.PRNGKey(0)
    k1, k2, k3, k4 = jax.random.split(key, 4)

    # Small shape consistent with a generic elementwise add module.
    x1 = jax.random.normal(k1, (2, 4, 16, 16), dtype=jnp.float32)
    x2 = jax.random.normal(k2, (2, 4, 16, 16), dtype=jnp.float32)
    out = my_network_forward(x1, x2, force_pallas=True)  # force the Pallas path
    out = jax.block_until_ready(out)
    ref = x1 + x2
    assert out.shape == ref.shape and out.dtype == ref.dtype
    assert jnp.allclose(out, ref, atol=1e-6, rtol=1e-6)

    # Larger shape that exercises the multi-block, lane-dense tiled path.
    y1 = jax.random.normal(k3, (2048, 1024), dtype=jnp.float32)
    y2 = jax.random.normal(k4, (2048, 1024), dtype=jnp.float32)
    out2 = my_network_forward(y1, y2, force_pallas=True)
    out2 = jax.block_until_ready(out2)
    ref2 = y1 + y2
    assert out2.shape == ref2.shape and out2.dtype == ref2.dtype
    assert jnp.allclose(out2, ref2, atol=1e-6, rtol=1e-6)

    # bf16 path exercises the dtype-aware (16,128) sublane rounding.
    z1 = jax.random.normal(k3, (512, 512), dtype=jnp.bfloat16)
    z2 = jax.random.normal(k4, (512, 512), dtype=jnp.bfloat16)
    out3 = my_network_forward(z1, z2, force_pallas=True)
    out3 = jax.block_until_ready(out3)
    ref3 = z1 + z2
    assert out3.shape == ref3.shape and out3.dtype == ref3.dtype
    assert jnp.allclose(out3.astype(jnp.float32), ref3.astype(jnp.float32), atol=1e-2, rtol=1e-2)

    print("KERNEL_OK")
</pallas_src>

<mosaic_0001>
module attributes {stable_mosaic.version = 11 : i64} {
  func.func @_add_kernel(%arg0: i32, %arg1: memref<8x256xf32, #tpu.memory_space<vmem>>, %arg2: memref<8x256xf32, #tpu.memory_space<vmem>>, %arg3: memref<8x256xf32, #tpu.memory_space<vmem>>) attributes {dimension_semantics = [#tpu.dimension_semantics<parallel>], iteration_bounds = array<i64: 1>, scalar_prefetch = 0 : i64, scratch_operands = 0 : i64, tpu.core_type = #tpu.core_type<tc>, window_params = [{transform_indices = @transform_0, window_bounds = array<i64: 8, 256>}, {transform_indices = @transform_1, window_bounds = array<i64: 8, 256>}, {transform_indices = @transform_2, window_bounds = array<i64: 8, 256>}]} {
    %c0 = arith.constant 0 : index
    %c0_0 = arith.constant 0 : index
    %0 = vector.load %arg1[%c0, %c0_0] : memref<8x256xf32, #tpu.memory_space<vmem>>, vector<8x256xf32>
    %c0_1 = arith.constant 0 : index
    %c0_2 = arith.constant 0 : index
    %1 = vector.load %arg2[%c0_1, %c0_2] : memref<8x256xf32, #tpu.memory_space<vmem>>, vector<8x256xf32>
    %2 = arith.addf %0, %1 : vector<8x256xf32>
    %c0_3 = arith.constant 0 : index
    %c0_4 = arith.constant 0 : index
    %3 = vector.load %arg3[%c0_3, %c0_4] : memref<8x256xf32, #tpu.memory_space<vmem>>, vector<8x256xf32>
    tpu.vector_store %arg3[%c0_3, %c0_4], %2 {strides = array<i32>} : memref<8x256xf32, #tpu.memory_space<vmem>>, vector<8x256xf32>,
    return
  }
  func.func @transform_0(%arg0: i32) -> (i32, i32) {
    %c0_i32 = arith.constant 0 : i32
    %c0_i32_0 = arith.constant 0 : i32
    return %arg0, %c0_i32 : i32, i32
  }
  func.func @transform_1(%arg0: i32) -> (i32, i32) {
    %c0_i32 = arith.constant 0 : i32
    %c0_i32_0 = arith.constant 0 : i32
    return %arg0, %c0_i32 : i32, i32
  }
  func.func @transform_2(%arg0: i32) -> (i32, i32) {
    %c0_i32 = arith.constant 0 : i32
    %c0_i32_0 = arith.constant 0 : i32
    return %arg0, %c0_i32 : i32, i32
  }
}

</mosaic_0001>

<llo_original>
// kernel: tpu_custom_call.1
$region0: #{tpu_custom_call.1}
  #allocation0 [shape = 'u32[]', space=smem, size = 0x4, offset = 0x4, fixed_abs, tag = 'smem constant byte address 0x4 - core index']
  #allocation1 [shape = 'u32[144,128]{1,0:T(1,128)}', space=vmem, size = 0x12000, scoped, tag = 'internal scratch']
  %s0 = inlined_call_operand.hbm [shape: f32[8,256], index: 0, kind: input, shape index: {}]
  %s1 = inlined_call_operand.hbm [shape: f32[8,256], index: 1, kind: input, shape index: {}]
  %s2 = inlined_call_operand.hbm [shape: f32[8,256], index: 2, kind: output, shape index: {}]
  %s3 = sld [smem:[#allocation0]]
  $region26: #{tpu_custom_call.1} parent=0
    _
  %s5 = ssub.s32 1, %s3
  %s6 = scalar_select 0, %s5, %s3
  $region1: #{tpu_custom_call.1} parent=0
    #allocation2 [shape = 'u8[8192]{0}', space=vmem, size = 0x2000, scoped, tag = 'input window, operand 0, single buffered']
    #allocation3 [shape = 's32[1]{0}', space=sflag, size = 0x4, scoped, tag = 'scoped memory for tpu_custom_call.1']
    #allocation4 [shape = 's32[1]{0}', space=sflag, size = 0x4, scoped, tag = 'scoped memory for tpu_custom_call.1']
    #allocation5 [shape = 'u8[8192]{0}', space=vmem, size = 0x2000, scoped, tag = 'input window, operand 1, single buffered']
    #allocation6 [shape = 's32[1]{0}', space=sflag, size = 0x4, scoped, tag = 'scoped memory for tpu_custom_call.1']
    #allocation7 [shape = 'u8[8192]{0}', space=vmem, size = 0x2000, scoped, tag = 'output window, operand 0, single buffered']
    %7 = vsyncpa [#allocation3], 0
    %8 = vsyncpa [#allocation6], 0
    %9 = vsyncpa [#allocation4], 0
    // Predicated region
    $region2: #{tpu_custom_call.1} parent=1 // pred_check
      _
    $region3: #{tpu_custom_call.1} parent=1 // pred_check_branch
      %11 = sbr.rel (0) target = $region5
    $region4: #{tpu_custom_call.1} parent=1 // pred_region
      %s13 = ssub.s32 256, 256
      %14 = vsyncadd [#allocation3], %s13
      %s16 = sshll.u32 [#allocation2], 4
      %s17 = int_to_ptr.vmem [resolvable:$true] %s16
      %19 = dma.hbm_to_vmem [thread:$0]  %s0, 256, %s17, [#allocation3]
    $region5: #{tpu_custom_call.1} parent=1 // pred_fallthru
      _
    // Predicated region
    $region6: #{tpu_custom_call.1} parent=1 // pred_check
      _
    $region7: #{tpu_custom_call.1} parent=1 // pred_check_branch
      %21 = sbr.rel (0) target = $region9
    $region8: #{tpu_custom_call.1} parent=1 // pred_region
      %s23 = ssub.s32 256, 256
      %24 = vsyncadd [#allocation6], %s23
      %s26 = sshll.u32 [#allocation5], 4
      %s27 = int_to_ptr.vmem [resolvable:$true] %s26
      %29 = dma.hbm_to_vmem [thread:$0]  %s1, 256, %s27, [#allocation6]
    $region9: #{tpu_custom_call.1} parent=1 // pred_fallthru
      _
    // Predicated region
    $region10: #{tpu_custom_call.1} parent=1 // pred_check
      _
    $region11: #{tpu_custom_call.1} parent=1 // pred_check_branch
      %31 = sbr.rel (0) target = $region13
    $region12: #{tpu_custom_call.1} parent=1 // pred_region
      %32 = dma.done [#allocation3], 256
    $region13: #{tpu_custom_call.1} parent=1 // pred_fallthru
      _
    // Predicated region
    $region14: #{tpu_custom_call.1} parent=1 // pred_check
      _
    $region15: #{tpu_custom_call.1} parent=1 // pred_check_branch
      %34 = sbr.rel (0) target = $region17
    $region16: #{tpu_custom_call.1} parent=1 // pred_region
      %35 = dma.done [#allocation6], 256
    $region17: #{tpu_custom_call.1} parent=1 // pred_fallthru
      _
    %v36 = vld [vmem:[#allocation2] sm:$0xff]
    %v37 = vld [vmem:[#allocation2 + $0x8] sm:$0xff]
    %v38 = vld [vmem:[#allocation5] sm:$0xff]
    %v39 = vld [vmem:[#allocation5 + $0x8] sm:$0xff]
    %v40 = vadd.f32 %v36, %v38
    %v41 = vadd.f32 %v37, %v39
    %42 = vst [vmem:[#allocation7] sm:$0xff] %v40
    %43 = vst [vmem:[#allocation7 + $0x8] sm:$0xff] %v41
    // Predicated region
    $region18: #{tpu_custom_call.1} parent=1 // pred_check
      _
    $region19: #{tpu_custom_call.1} parent=1 // pred_check_branch
      %45 = sbr.rel (0) target = $region21
    $region20: #{tpu_custom_call.1} parent=1 // pred_region
      %s47 = ssub.s32 256, 256
      %48 = vsyncadd [#allocation4], %s47
      %s50 = sshll.u32 [#allocation7], 4
      %s51 = int_to_ptr.vmem [resolvable:$true] %s50
      %53 = dma.vmem_to_hbm [thread:$0]  %s51, 256, %s2, [#allocation4]
    $region21: #{tpu_custom_call.1} parent=1 // pred_fallthru
      _
    // Predicated region
    $region22: #{tpu_custom_call.1} parent=1 // pred_check
      _
    $region23: #{tpu_custom_call.1} parent=1 // pred_check_branch
      %55 = sbr.rel (0) target = $region25
    $region24: #{tpu_custom_call.1} parent=1 // pred_region
      %56 = dma.done [#allocation4], 256
    $region25: #{tpu_custom_call.1} parent=1 // pred_fallthru
      _
    %57 = vsyncpa [#allocation3], 1
    %58 = vsyncpa [#allocation6], 1
    %59 = vsyncpa [#allocation4], 1

</llo_original>
